<compile_context>
chip_gen: v7x
topology: tpu7x:2x2x1
jax: 0.10.0
libtpu: 0.0.40
codegen_flags: <defaults>
</compile_context>

<pallas_src>
import functools

import jax
import jax.numpy as jnp
from jax.experimental import pallas as pl
from jax.experimental.pallas import tpu as pltpu


# ------------------------------ fused kernel ------------------------------- #

def _autoencoder_fused_kernel(x_ref, w1_ref, b1_ref, w2_ref, b2_ref,
                              w3_ref, b3_ref, w4_ref, b4_ref, o_ref,
                              *, compute_dtype):
    """enc1 -> enc2 -> dec1 -> dec2; intermediates never round-trip to HBM."""
    x = x_ref[...]

    def dense(a, w_ref, b_ref):
        # MXU matmul (bf16 operands on the fast path), f32 accumulate,
        # f32 VPU broadcast bias add.
        return jnp.dot(a.astype(compute_dtype),
                       w_ref[...].astype(compute_dtype),
                       preferred_element_type=jnp.float32) + b_ref[...]

    h = jnp.maximum(dense(x, w1_ref, b1_ref), 0.0)       # enc1: D -> H, ReLU
    z = jnp.maximum(dense(h, w2_ref, b2_ref), 0.0)       # enc2: H -> Z, ReLU
    h2 = jnp.maximum(dense(z, w3_ref, b3_ref), 0.0)      # dec1: Z -> H, ReLU
    y = dense(h2, w4_ref, b4_ref)                        # dec2: H -> D
    o_ref[...] = jax.nn.sigmoid(y).astype(o_ref.dtype)   # exp -> EUP slot


# ------------------------------ Python wrapper ------------------------------ #

def autoencoder_forward_pallas(params, x, *, batch_tile=1024,
                               gridless_max_bytes=8 << 20,
                               vmem_limit_bytes=48 << 20,
                               use_bf16=True):
    """Fused AutoEncoder forward.

    Small/medium batches (in+out <= gridless_max_bytes): grid-less, every
    operand a whole VMEM-resident block (no pipeline overhead).
    Larger batches: batch-tiled grid with >= 2 steps, batch axis "parallel"
    so both v7x TensorCores get work; weights/biases replicated per step.
    """
    w1, b1 = params["enc1"]
    w2, b2 = params["enc2"]
    w3, b3 = params["dec1"]
    w4, b4 = params["dec2"]
    B, D = x.shape
    D_out = w4.shape[1]
    flat = (x, w1, b1, w2, b2, w3, b3, w4, b4)
    out_shape = jax.ShapeDtypeStruct((B, D_out), jnp.float32)
    kernel = functools.partial(
        _autoencoder_fused_kernel,
        compute_dtype=jnp.bfloat16 if use_bf16 else jnp.float32)

    in_out_bytes = B * (D + D_out) * x.dtype.itemsize

    if in_out_bytes <= gridless_max_bytes:
        # Grid-less path: no pipeline prologue/epilogue, no double buffering.
        vmem = pl.BlockSpec(memory_space=pltpu.MemorySpace.VMEM)
        return pl.pallas_call(
            kernel,
            out_shape=out_shape,
            in_specs=[vmem] * len(flat),
            out_specs=vmem,
            compiler_params=pltpu.CompilerParams(
                vmem_limit_bytes=vmem_limit_bytes),
        )(*flat)

    # Batch-tiled path for large batches.  Clamp the tile so there are always
    # >= 2 grid steps (otherwise "parallel" can't shard over the v7x cores).
    tile = min(batch_tile, B // 2)
    assert B % tile == 0, "pad the batch to a multiple of the batch tile"

    def rep(arr):  # weights/biases: the same whole-array block every step
        return pl.BlockSpec(arr.shape, lambda i: (0, 0))

    in_specs = [
        pl.BlockSpec((tile, D), lambda i: (i, 0)),
        rep(w1), rep(b1), rep(w2), rep(b2), rep(w3), rep(b3), rep(w4), rep(b4),
    ]
    return pl.pallas_call(
        kernel,
        out_shape=out_shape,
        grid=(B // tile,),
        in_specs=in_specs,
        out_specs=pl.BlockSpec((tile, D_out), lambda i: (i, 0)),
        compiler_params=pltpu.CompilerParams(
            dimension_semantics=("parallel",),   # shard batch over TCs (v7x)
            vmem_limit_bytes=vmem_limit_bytes,
        ),
    )(*flat)


# ------------------------- params / pure-JAX reference ---------------------- #

def init_autoencoder_params(key, d_in=128, d_hidden=64, d_latent=32):
    """Deterministic synthetic parameters (PyTorch-Linear-like uniform init)."""
    def linear_init(k, fan_in, fan_out):
        kw, kb = jax.random.split(k)
        bound = 1.0 / jnp.sqrt(fan_in)
        w = jax.random.uniform(kw, (fan_in, fan_out), jnp.float32, -bound, bound)
        b = jax.random.uniform(kb, (1, fan_out), jnp.float32, -bound, bound)
        return w, b

    k1, k2, k3, k4 = jax.random.split(key, 4)
    return {
        "enc1": linear_init(k1, d_in, d_hidden),
        "enc2": linear_init(k2, d_hidden, d_latent),
        "dec1": linear_init(k3, d_latent, d_hidden),
        "dec2": linear_init(k4, d_hidden, d_in),
    }


def autoencoder_reference(params, x):
    def lin(a, w, b):
        return jnp.dot(a, w, preferred_element_type=jnp.float32) + b
    h = jax.nn.relu(lin(x, *params["enc1"]))
    z = jax.nn.relu(lin(h, *params["enc2"]))
    h2 = jax.nn.relu(lin(z, *params["dec1"]))
    return jax.nn.sigmoid(lin(h2, *params["dec2"]))


# ----------------------------------- main ----------------------------------- #

if __name__ == "__main__":
    key = jax.random.PRNGKey(0)
    k_params, k_x, k_med, k_big = jax.random.split(key, 4)

    D_IN, D_HID, D_LAT = 128, 64, 32
    params = init_autoencoder_params(k_params, D_IN, D_HID, D_LAT)

    # --- tiny batch: grid-less, exact-f32 path vs f32 reference ------------ #
    B_SMALL = 8
    x = jax.random.normal(k_x, (B_SMALL, D_IN), dtype=jnp.float32)
    fwd_f32 = jax.jit(functools.partial(autoencoder_forward_pallas,
                                        use_bf16=False))
    out = jax.block_until_ready(fwd_f32(params, x))
    ref = autoencoder_reference(params, x)
    assert out.shape == (B_SMALL, D_IN), out.shape
    assert jnp.allclose(out, ref, atol=1e-4, rtol=1e-4), (
        f"small-batch max abs err = {jnp.max(jnp.abs(out - ref))}"
    )

    # --- medium batch: grid-less (<= 8 MiB in+out), bf16-MXU fast path ----- #
    B_MED = 1024
    x_med = jax.random.normal(k_med, (B_MED, D_IN), dtype=jnp.float32)
    fwd = jax.jit(autoencoder_forward_pallas)
    out_med = jax.block_until_ready(fwd(params, x_med))
    ref_med = autoencoder_reference(params, x_med)
    assert out_med.shape == (B_MED, D_IN), out_med.shape
    # bf16 MXU operands (f32 accumulate) -> relax tolerance vs f32 reference.
    assert jnp.allclose(out_med, ref_med, atol=2e-2, rtol=2e-2), (
        f"medium-batch max abs err = {jnp.max(jnp.abs(out_med - ref_med))}"
    )

    # --- large batch: batch-tiled grid path (forced), 1024-row tiles ------- #
    B_BIG, TILE = 4096, 1024      # 4 grid steps -> both v7x TCs stay busy
    x_big = jax.random.normal(k_big, (B_BIG, D_IN), dtype=jnp.float32)
    fwd_tiled = jax.jit(functools.partial(autoencoder_forward_pallas,
                                          batch_tile=TILE,
                                          gridless_max_bytes=0))
    out_big = jax.block_until_ready(fwd_tiled(params, x_big))
    ref_big = autoencoder_reference(params, x_big)
    assert out_big.shape == (B_BIG, D_IN), out_big.shape
    assert jnp.allclose(out_big, ref_big, atol=2e-2, rtol=2e-2), (
        f"tiled max abs err = {jnp.max(jnp.abs(out_big - ref_big))}"
    )

    print("KERNEL_OK")
</pallas_src>

<mosaic_0001>
module attributes {stable_mosaic.version = 11 : i64} {
  func.func @_autoencoder_fused_kernel(%arg0: memref<8x128xf32, #tpu.memory_space<vmem>>, %arg1: memref<128x64xf32, #tpu.memory_space<vmem>>, %arg2: memref<1x64xf32, #tpu.memory_space<vmem>>, %arg3: memref<64x32xf32, #tpu.memory_space<vmem>>, %arg4: memref<1x32xf32, #tpu.memory_space<vmem>>, %arg5: memref<32x64xf32, #tpu.memory_space<vmem>>, %arg6: memref<1x64xf32, #tpu.memory_space<vmem>>, %arg7: memref<64x128xf32, #tpu.memory_space<vmem>>, %arg8: memref<1x128xf32, #tpu.memory_space<vmem>>, %arg9: memref<8x128xf32, #tpu.memory_space<vmem>>) attributes {dimension_semantics = [], scalar_prefetch = 0 : i64, scratch_operands = 0 : i64, tpu.core_type = #tpu.core_type<tc>} {
    %c0 = arith.constant 0 : index
    %c0_0 = arith.constant 0 : index
    %0 = vector.load %arg0[%c0, %c0_0] : memref<8x128xf32, #tpu.memory_space<vmem>>, vector<8x128xf32>
    %c0_1 = arith.constant 0 : index
    %c0_2 = arith.constant 0 : index
    %1 = vector.load %arg1[%c0_1, %c0_2] : memref<128x64xf32, #tpu.memory_space<vmem>>, vector<128x64xf32>
    %cst = arith.constant dense<0.000000e+00> : vector<8x64xf32>
    %2 = tpu.matmul %0, %1, %cst {dimension_numbers = #tpu.dot_dimension_numbers<[1], [0], [0], [1], [0, 0, 1, 1], [], []>} : vector<8x128xf32>, vector<128x64xf32>, vector<8x64xf32> -> vector<8x64xf32>
    %c0_3 = arith.constant 0 : index
    %c0_4 = arith.constant 0 : index
    %3 = vector.load %arg2[%c0_3, %c0_4] : memref<1x64xf32, #tpu.memory_space<vmem>>, vector<1x64xf32>
    %4 = vector.broadcast %3 : vector<1x64xf32> to vector<8x64xf32>
    %5 = arith.addf %2, %4 : vector<8x64xf32>
    %cst_5 = arith.constant 0.000000e+00 : f32
    %6 = vector.broadcast %cst_5 : f32 to vector<8x64xf32>
    %7 = arith.maximumf %5, %6 : vector<8x64xf32>
    %c0_6 = arith.constant 0 : index
    %c0_7 = arith.constant 0 : index
    %8 = vector.load %arg3[%c0_6, %c0_7] : memref<64x32xf32, #tpu.memory_space<vmem>>, vector<64x32xf32>
    %cst_8 = arith.constant dense<0.000000e+00> : vector<8x32xf32>
    %9 = tpu.matmul %7, %8, %cst_8 {dimension_numbers = #tpu.dot_dimension_numbers<[1], [0], [0], [1], [0, 0, 1, 1], [], []>} : vector<8x64xf32>, vector<64x32xf32>, vector<8x32xf32> -> vector<8x32xf32>
    %c0_9 = arith.constant 0 : index
    %c0_10 = arith.constant 0 : index
    %10 = vector.load %arg4[%c0_9, %c0_10] : memref<1x32xf32, #tpu.memory_space<vmem>>, vector<1x32xf32>
    %11 = vector.broadcast %10 : vector<1x32xf32> to vector<8x32xf32>
    %12 = arith.addf %9, %11 : vector<8x32xf32>
    %cst_11 = arith.constant 0.000000e+00 : f32
    %13 = vector.broadcast %cst_11 : f32 to vector<8x32xf32>
    %14 = arith.maximumf %12, %13 : vector<8x32xf32>
    %c0_12 = arith.constant 0 : index
    %c0_13 = arith.constant 0 : index
    %15 = vector.load %arg5[%c0_12, %c0_13] : memref<32x64xf32, #tpu.memory_space<vmem>>, vector<32x64xf32>
    %cst_14 = arith.constant dense<0.000000e+00> : vector<8x64xf32>
    %16 = tpu.matmul %14, %15, %cst_14 {dimension_numbers = #tpu.dot_dimension_numbers<[1], [0], [0], [1], [0, 0, 1, 1], [], []>} : vector<8x32xf32>, vector<32x64xf32>, vector<8x64xf32> -> vector<8x64xf32>
    %c0_15 = arith.constant 0 : index
    %c0_16 = arith.constant 0 : index
    %17 = vector.load %arg6[%c0_15, %c0_16] : memref<1x64xf32, #tpu.memory_space<vmem>>, vector<1x64xf32>
    %18 = vector.broadcast %17 : vector<1x64xf32> to vector<8x64xf32>
    %19 = arith.addf %16, %18 : vector<8x64xf32>
    %cst_17 = arith.constant 0.000000e+00 : f32
    %20 = vector.broadcast %cst_17 : f32 to vector<8x64xf32>
    %21 = arith.maximumf %19, %20 : vector<8x64xf32>
    %c0_18 = arith.constant 0 : index
    %c0_19 = arith.constant 0 : index
    %22 = vector.load %arg7[%c0_18, %c0_19] : memref<64x128xf32, #tpu.memory_space<vmem>>, vector<64x128xf32>
    %cst_20 = arith.constant dense<0.000000e+00> : vector<8x128xf32>
    %23 = tpu.matmul %21, %22, %cst_20 {dimension_numbers = #tpu.dot_dimension_numbers<[1], [0], [0], [1], [0, 0, 1, 1], [], []>} : vector<8x64xf32>, vector<64x128xf32>, vector<8x128xf32> -> vector<8x128xf32>
    %c0_21 = arith.constant 0 : index
    %c0_22 = arith.constant 0 : index
    %24 = vector.load %arg8[%c0_21, %c0_22] : memref<1x128xf32, #tpu.memory_space<vmem>>, vector<1x128xf32>
    %25 = vector.broadcast %24 : vector<1x128xf32> to vector<8x128xf32>
    %26 = arith.addf %23, %25 : vector<8x128xf32>
    %27 = arith.negf %26 : vector<8x128xf32>
    %28 = math.exp %27 : vector<8x128xf32>
    %cst_23 = arith.constant 1.000000e+00 : f32
    %29 = vector.broadcast %cst_23 : f32 to vector<8x128xf32>
    %30 = arith.addf %29, %28 : vector<8x128xf32>
    %31 = arith.divf %29, %30 : vector<8x128xf32>
    %c0_24 = arith.constant 0 : index
    %c0_25 = arith.constant 0 : index
    %32 = vector.load %arg9[%c0_24, %c0_25] : memref<8x128xf32, #tpu.memory_space<vmem>>, vector<8x128xf32>
    tpu.vector_store %arg9[%c0_24, %c0_25], %31 {strides = array<i32>} : memref<8x128xf32, #tpu.memory_space<vmem>>, vector<8x128xf32>,
    return
  }
}

</mosaic_0001>

<llo_original>
// kernel: autoencoder_forward_pallas.1
$region0: #{autoencoder_forward_pallas.1}
  #allocation0 [shape = 'u32[]', space=smem, size = 0x4, offset = 0x4, fixed_abs, tag = 'smem constant byte address 0x4 - core index']
  #allocation1 [shape = 'u32[144,128]{1,0:T(1,128)}', space=vmem, size = 0x12000, scoped, tag = 'internal scratch']
  %s0 = inlined_call_operand.vmem [shape: f32[8,128], index: 0, kind: input, shape index: {}]
  %s1 = inlined_call_operand.vmem [shape: f32[128,64], index: 1, kind: input, shape index: {}]
  %s2 = inlined_call_operand.vmem [shape: f32[1,64], index: 2, kind: input, shape index: {}]
  %s3 = inlined_call_operand.vmem [shape: f32[64,32], index: 3, kind: input, shape index: {}]
  %s4 = inlined_call_operand.vmem [shape: f32[1,32], index: 4, kind: input, shape index: {}]
  %s5 = inlined_call_operand.vmem [shape: f32[32,64], index: 5, kind: input, shape index: {}]
  %s6 = inlined_call_operand.vmem [shape: f32[1,64], index: 6, kind: input, shape index: {}]
  %s7 = inlined_call_operand.vmem [shape: f32[64,128], index: 7, kind: input, shape index: {}]
  %s8 = inlined_call_operand.vmem [shape: f32[1,128], index: 8, kind: input, shape index: {}]
  %s9 = inlined_call_operand.hbm [shape: f32[8,128], index: 9, kind: output, shape index: {}]
  %s10 = sld [smem:[#allocation0]]
  $region46: #{autoencoder_forward_pallas.1} parent=0
    _
  %s12 = ssub.s32 1, %s10
  %s13 = scalar_select 0, %s12, %s10
  $region1: #{autoencoder_forward_pallas.1} parent=0
    #allocation2 [shape = 'u8[4096]{0}', space=vmem, size = 0x1000, scoped, tag = 'output window, operand 0, single buffered']
    #allocation3 [shape = 's32[1]{0}', space=sflag, size = 0x4, scoped, tag = 'scoped memory for autoencoder_forward_pallas.1']
    %14 = vsyncpa [#allocation3], 0
    // Predicated region
    $region2: #{autoencoder_forward_pallas.1} parent=1 // pred_check
      _
    $region3: #{autoencoder_forward_pallas.1} parent=1 // pred_check_branch
      %16 = sbr.rel (0) target = $region5
    $region4: #{autoencoder_forward_pallas.1} parent=1 // pred_region
      _
    $region5: #{autoencoder_forward_pallas.1} parent=1 // pred_fallthru
      _
    // Predicated region
    $region6: #{autoencoder_forward_pallas.1} parent=1 // pred_check
      _
    $region7: #{autoencoder_forward_pallas.1} parent=1 // pred_check_branch
      %18 = sbr.rel (0) target = $region9
    $region8: #{autoencoder_forward_pallas.1} parent=1 // pred_region
      _
    $region9: #{autoencoder_forward_pallas.1} parent=1 // pred_fallthru
      _
    // Predicated region
    $region10: #{autoencoder_forward_pallas.1} parent=1 // pred_check
      _
    $region11: #{autoencoder_forward_pallas.1} parent=1 // pred_check_branch
      %20 = sbr.rel (0) target = $region13
    $region12: #{autoencoder_forward_pallas.1} parent=1 // pred_region
      _
    $region13: #{autoencoder_forward_pallas.1} parent=1 // pred_fallthru
      _
    // Predicated region
    $region14: #{autoencoder_forward_pallas.1} parent=1 // pred_check
      _
    $region15: #{autoencoder_forward_pallas.1} parent=1 // pred_check_branch
      %22 = sbr.rel (0) target = $region17
    $region16: #{autoencoder_forward_pallas.1} parent=1 // pred_region
      _
    $region17: #{autoencoder_forward_pallas.1} parent=1 // pred_fallthru
      _
    // Predicated region
    $region18: #{autoencoder_forward_pallas.1} parent=1 // pred_check
      _
    $region19: #{autoencoder_forward_pallas.1} parent=1 // pred_check_branch
      %24 = sbr.rel (0) target = $region21
    $region20: #{autoencoder_forward_pallas.1} parent=1 // pred_region
      _
    $region21: #{autoencoder_forward_pallas.1} parent=1 // pred_fallthru
      _
    // Predicated region
    $region22: #{autoencoder_forward_pallas.1} parent=1 // pred_check
      _
    $region23: #{autoencoder_forward_pallas.1} parent=1 // pred_check_branch
      %26 = sbr.rel (0) target = $region25
    $region24: #{autoencoder_forward_pallas.1} parent=1 // pred_region
      _
    $region25: #{autoencoder_forward_pallas.1} parent=1 // pred_fallthru
      _
    // Predicated region
    $region26: #{autoencoder_forward_pallas.1} parent=1 // pred_check
      _
    $region27: #{autoencoder_forward_pallas.1} parent=1 // pred_check_branch
      %28 = sbr.rel (0) target = $region29
    $region28: #{autoencoder_forward_pallas.1} parent=1 // pred_region
      _
    $region29: #{autoencoder_forward_pallas.1} parent=1 // pred_fallthru
      _
    // Predicated region
    $region30: #{autoencoder_forward_pallas.1} parent=1 // pred_check
      _
    $region31: #{autoencoder_forward_pallas.1} parent=1 // pred_check_branch
      %30 = sbr.rel (0) target = $region33
    $region32: #{autoencoder_forward_pallas.1} parent=1 // pred_region
      _
    $region33: #{autoencoder_forward_pallas.1} parent=1 // pred_fallthru
      _
    // Predicated region
    $region34: #{autoencoder_forward_pallas.1} parent=1 // pred_check
      _
    $region35: #{autoencoder_forward_pallas.1} parent=1 // pred_check_branch
      %32 = sbr.rel (0) target = $region37
    $region36: #{autoencoder_forward_pallas.1} parent=1 // pred_region
      _
    $region37: #{autoencoder_forward_pallas.1} parent=1 // pred_fallthru
      _
    %v33 = vld [vmem:[%s0] sm:$0xff]
    %v34 = vld [vmem:[%s1] sm:$0xff]
    %v35 = vld [vmem:[%s1 + $0x8] sm:$0xff]
    %v36 = vld [vmem:[%s1 + $0x10] sm:$0xff]
    %v37 = vld [vmem:[%s1 + $0x18] sm:$0xff]
    %v38 = vld [vmem:[%s1 + $0x20] sm:$0xff]
    %v39 = vld [vmem:[%s1 + $0x28] sm:$0xff]
    %v40 = vld [vmem:[%s1 + $0x30] sm:$0xff]
    %v41 = vld [vmem:[%s1 + $0x38] sm:$0xff]
    %v42 = vld [vmem:[%s1 + $0x40] sm:$0xff]
    %v43 = vld [vmem:[%s1 + $0x48] sm:$0xff]
    %v44 = vld [vmem:[%s1 + $0x50] sm:$0xff]
    %v45 = vld [vmem:[%s1 + $0x58] sm:$0xff]
    %v46 = vld [vmem:[%s1 + $0x60] sm:$0xff]
    %v47 = vld [vmem:[%s1 + $0x68] sm:$0xff]
    %v48 = vld [vmem:[%s1 + $0x70] sm:$0xff]
    %v49 = vld [vmem:[%s1 + $0x78] sm:$0xff]
    %v50 = vld [vmem:[%s2] sm:$0x1]
    %v52 = vlaneseq
    %v53 = vshrl.u32 %v52, 7
    %v54 = vsub.s32 0, %v53
    %v55 = vrot.slane %v50, %v54
    %57 = vmatprep.subr.mxu0 0.0
    %58 = vmatpush1.msra.mxu0 %v34
    %59 = vmatprep.subr.mxu0 0.0
    %60 = vmatpush1.msra.mxu0 %v35
    %61 = vmatprep.subr.mxu0 0.0
    %62 = vmatpush1.msra.mxu0 %v36
    %63 = vmatprep.subr.mxu0 0.0
    %64 = vmatpush1.msra.mxu0 %v37
    %65 = vmatprep.subr.mxu0 0.0
    %66 = vmatpush1.msra.mxu0 %v38
    %67 = vmatprep.subr.mxu0 0.0
    %68 = vmatpush1.msra.mxu0 %v39
    %69 = vmatprep.subr.mxu0 0.0
    %70 = vmatpush1.msra.mxu0 %v40
    %71 = vmatprep.subr.mxu0 0.0
    %72 = vmatpush1.msra.mxu0 %v41
    %73 = vmatprep.subr.mxu0 0.0
    %74 = vmatpush1.msra.mxu0 %v42
    %75 = vmatprep.subr.mxu0 0.0
    %76 = vmatpush1.msra.mxu0 %v43
    %77 = vmatprep.subr.mxu0 0.0
    %78 = vmatpush1.msra.mxu0 %v44
    %79 = vmatprep.subr.mxu0 0.0
    %80 = vmatpush1.msra.mxu0 %v45
    %81 = vmatprep.subr.mxu0 0.0
    %82 = vmatpush1.msra.mxu0 %v46
    %83 = vmatprep.subr.mxu0 0.0
    %84 = vmatpush1.msra.mxu0 %v47
    %85 = vmatprep.subr.mxu0 0.0
    %86 = vmatpush1.msra.mxu0 %v48
    %87 = vmatprep.subr.mxu0 0.0
    %88 = vmatpush1.msra.mxu0 %v49
    %89 = vmatprep.subr.mxu0 0.0
    %90 = vmatpush1.msra.mxu0 0.0
    %91 = vmatprep.subr.mxu0 0.0
    %92 = vmatpush1.msra.mxu0 0.0
    %93 = vmatprep.subr.mxu0 0.0
    %94 = vmatpush1.msra.mxu0 0.0
    %95 = vmatprep.subr.mxu0 0.0
    %96 = vmatpush1.msra.mxu0 0.0
    %97 = vmatprep.subr.mxu0 0.0
    %98 = vmatpush1.msra.mxu0 0.0
    %99 = vmatprep.subr.mxu0 0.0
    %100 = vmatpush1.msra.mxu0 0.0
    %101 = vmatprep.subr.mxu0 0.0
    %102 = vmatpush1.msra.mxu0 0.0
    %103 = vmatprep.subr.mxu0 0.0
    %104 = vmatpush1.msra.mxu0 0.0
    %105 = vmatprep.subr.mxu0 0.0
    %106 = vmatpush1.msra.mxu0 0.0
    %107 = vmatprep.subr.mxu0 0.0
    %108 = vmatpush1.msra.mxu0 0.0
    %109 = vmatprep.subr.mxu0 0.0
    %110 = vmatpush1.msra.mxu0 0.0
    %111 = vmatprep.subr.mxu0 0.0
    %112 = vmatpush1.msra.mxu0 0.0
    %113 = vmatprep.subr.mxu0 0.0
    %114 = vmatpush1.msra.mxu0 0.0
    %115 = vmatprep.subr.mxu0 0.0
    %116 = vmatpush1.msra.mxu0 0.0
    %117 = vmatprep.subr.mxu0 0.0
    %118 = vmatpush1.msra.mxu0 0.0
    %119 = vmatprep.subr.mxu0 0.0
    %120 = vmatpush1.msra.mxu0 0.0
    %121 = vmatprep.mubr.f32.mxu0 0.0
    %122 = vmatmul.mubr.f32.gmra.mrb[0].mxu0 %v33
    %v123 = vpop.f32.mrb[0].mxu0
    %v124 = vadd.f32 %v55, %v123
    %v125 = vpop.f32.mrb[0].mxu0
    %126 = vdwg.mxu0
    %v127 = vmax.f32 %v124, 0.0
    %v128 = vld [vmem:[%s3] sm:$0xff]
    %v129 = vld [vmem:[%s3 + $0x8] sm:$0xff]
    %v130 = vld [vmem:[%s3 + $0x10] sm:$0xff]
    %v131 = vld [vmem:[%s3 + $0x18] sm:$0xff]
    %v132 = vld [vmem:[%s3 + $0x20] sm:$0xff]
    %v133 = vld [vmem:[%s3 + $0x28] sm:$0xff]
    %v134 = vld [vmem:[%s3 + $0x30] sm:$0xff]
    %v135 = vld [vmem:[%s3 + $0x38] sm:$0xff]
    %v136 = vld [vmem:[%s4] sm:$0x1]
    %v138 = vlaneseq
    %v139 = vshrl.u32 %v138, 7
    %v140 = vsub.s32 0, %v139
    %v141 = vrot.slane %v136, %v140
    %vm143 = vcmask 523264
    %v145 = vsel %vm143, %v127, 0
    %147 = vmatprep.subr.mxu0 0.0
    %148 = vmatpush1.msra.mxu0 %v128
    %149 = vmatprep.subr.mxu0 0.0
    %150 = vmatpush1.msra.mxu0 %v129
    %151 = vmatprep.subr.mxu0 0.0
    %152 = vmatpush1.msra.mxu0 %v130
    %153 = vmatprep.subr.mxu0 0.0
    %154 = vmatpush1.msra.mxu0 %v131
    %155 = vmatprep.subr.mxu0 0.0
    %156 = vmatpush1.msra.mxu0 %v132
    %157 = vmatprep.subr.mxu0 0.0
    %158 = vmatpush1.msra.mxu0 %v133
    %159 = vmatprep.subr.mxu0 0.0
    %160 = vmatpush1.msra.mxu0 %v134
    %161 = vmatprep.subr.mxu0 0.0
    %162 = vmatpush1.msra.mxu0 %v135
    %163 = vmatprep.subr.mxu0 0.0
    %164 = vmatpush1.msra.mxu0 0.0
    %165 = vmatprep.subr.mxu0 0.0
    %166 = vmatpush1.msra.mxu0 0.0
    %167 = vmatprep.subr.mxu0 0.0
    %168 = vmatpush1.msra.mxu0 0.0
    %169 = vmatprep.subr.mxu0 0.0
    %170 = vmatpush1.msra.mxu0 0.0
    %171 = vmatprep.subr.mxu0 0.0
    %172 = vmatpush1.msra.mxu0 0.0
    %173 = vmatprep.subr.mxu0 0.0
    %174 = vmatpush1.msra.mxu0 0.0
    %175 = vmatprep.subr.mxu0 0.0
    %176 = vmatpush1.msra.mxu0 0.0
    %177 = vmatprep.subr.mxu0 0.0
    %178 = vmatpush1.msra.mxu0 0.0
    %179 = vmatprep.subr.mxu0 0.0
    %180 = vmatpush1.msra.mxu0 0.0
    %181 = vmatprep.subr.mxu0 0.0
    %182 = vmatpush1.msra.mxu0 0.0
    %183 = vmatprep.subr.mxu0 0.0
    %184 = vmatpush1.msra.mxu0 0.0
    %185 = vmatprep.subr.mxu0 0.0
    %186 = vmatpush1.msra.mxu0 0.0
    %187 = vmatprep.subr.mxu0 0.0
    %188 = vmatpush1.msra.mxu0 0.0
    %189 = vmatprep.subr.mxu0 0.0
    %190 = vmatpush1.msra.mxu0 0.0
    %191 = vmatprep.subr.mxu0 0.0
    %192 = vmatpush1.msra.mxu0 0.0
    %193 = vmatprep.subr.mxu0 0.0
    %194 = vmatpush1.msra.mxu0 0.0
    %195 = vmatprep.subr.mxu0 0.0
    %196 = vmatpush1.msra.mxu0 0.0
    %197 = vmatprep.subr.mxu0 0.0
    %198 = vmatpush1.msra.mxu0 0.0
    %199 = vmatprep.subr.mxu0 0.0
    %200 = vmatpush1.msra.mxu0 0.0
    %201 = vmatprep.subr.mxu0 0.0
    %202 = vmatpush1.msra.mxu0 0.0
    %203 = vmatprep.subr.mxu0 0.0
    %204 = vmatpush1.msra.mxu0 0.0
    %205 = vmatprep.subr.mxu0 0.0
    %206 = vmatpush1.msra.mxu0 0.0
    %207 = vmatprep.subr.mxu0 0.0
    %208 = vmatpush1.msra.mxu0 0.0
    %209 = vmatprep.subr.mxu0 0.0
    %210 = vmatpush1.msra.mxu0 0.0
    %211 = vmatprep.mubr.f32.mxu0 0.0
    %212 = vmatmul.mubr.f32.gmra.mrb[0].mxu0 %v145
    %v213 = vpop.f32.mrb[0].mxu0
    %v214 = vadd.f32 %v141, %v213
    %v215 = vpop.f32.mrb[0].mxu0
    %216 = vdwg.mxu0
    %v217 = vmax.f32 %v214, 0.0
    %v218 = vld [vmem:[%s5] sm:$0xff]
    %v219 = vld [vmem:[%s5 + $0x8] sm:$0xff]
    %v220 = vld [vmem:[%s5 + $0x10] sm:$0xff]
    %v221 = vld [vmem:[%s5 + $0x18] sm:$0xff]
    %v222 = vld [vmem:[%s6] sm:$0x1]
    %v224 = vlaneseq
    %v225 = vshrl.u32 %v224, 7
    %v226 = vsub.s32 0, %v225
    %v227 = vrot.slane %v222, %v226
    %vm229 = vcmask 261120
    %v231 = vsel %vm229, %v217, 0
    %233 = vmatprep.subr.mxu0 0.0
    %234 = vmatpush1.msra.mxu0 %v218
    %235 = vmatprep.subr.mxu0 0.0
    %236 = vmatpush1.msra.mxu0 %v219
    %237 = vmatprep.subr.mxu0 0.0
    %238 = vmatpush1.msra.mxu0 %v220
    %239 = vmatprep.subr.mxu0 0.0
    %240 = vmatpush1.msra.mxu0 %v221
    %241 = vmatprep.subr.mxu0 0.0
    %242 = vmatpush1.msra.mxu0 0.0
    %243 = vmatprep.subr.mxu0 0.0
    %244 = vmatpush1.msra.mxu0 0.0
    %245 = vmatprep.subr.mxu0 0.0
    %246 = vmatpush1.msra.mxu0 0.0
    %247 = vmatprep.subr.mxu0 0.0
    %248 = vmatpush1.msra.mxu0 0.0
    %249 = vmatprep.subr.mxu0 0.0
    %250 = vmatpush1.msra.mxu0 0.0
    %251 = vmatprep.subr.mxu0 0.0
    %252 = vmatpush1.msra.mxu0 0.0
    %253 = vmatprep.subr.mxu0 0.0
    %254 = vmatpush1.msra.mxu0 0.0
    %255 = vmatprep.subr.mxu0 0.0
    %256 = vmatpush1.msra.mxu0 0.0
    %257 = vmatprep.subr.mxu0 0.0
    %258 = vmatpush1.msra.mxu0 0.0
    %259 = vmatprep.subr.mxu0 0.0
    %260 = vmatpush1.msra.mxu0 0.0
    %261 = vmatprep.subr.mxu0 0.0
    %262 = vmatpush1.msra.mxu0 0.0
    %263 = vmatprep.subr.mxu0 0.0
    %264 = vmatpush1.msra.mxu0 0.0
    %265 = vmatprep.subr.mxu0 0.0
    %266 = vmatpush1.msra.mxu0 0.0
    %267 = vmatprep.subr.mxu0 0.0
    %268 = vmatpush1.msra.mxu0 0.0
    %269 = vmatprep.subr.mxu0 0.0
    %270 = vmatpush1.msra.mxu0 0.0
    %271 = vmatprep.subr.mxu0 0.0
    %272 = vmatpush1.msra.mxu0 0.0
    %273 = vmatprep.subr.mxu0 0.0
    %274 = vmatpush1.msra.mxu0 0.0
    %275 = vmatprep.subr.mxu0 0.0
    %276 = vmatpush1.msra.mxu0 0.0
    %277 = vmatprep.subr.mxu0 0.0
    %278 = vmatpush1.msra.mxu0 0.0
    %279 = vmatprep.subr.mxu0 0.0
    %280 = vmatpush1.msra.mxu0 0.0
    %281 = vmatprep.subr.mxu0 0.0
    %282 = vmatpush1.msra.mxu0 0.0
    %283 = vmatprep.subr.mxu0 0.0
    %284 = vmatpush1.msra.mxu0 0.0
    %285 = vmatprep.subr.mxu0 0.0
    %286 = vmatpush1.msra.mxu0 0.0
    %287 = vmatprep.subr.mxu0 0.0
    %288 = vmatpush1.msra.mxu0 0.0
    %289 = vmatprep.subr.mxu0 0.0
    %290 = vmatpush1.msra.mxu0 0.0
    %291 = vmatprep.subr.mxu0 0.0
    %292 = vmatpush1.msra.mxu0 0.0
    %293 = vmatprep.subr.mxu0 0.0
    %294 = vmatpush1.msra.mxu0 0.0
    %295 = vmatprep.subr.mxu0 0.0
    %296 = vmatpush1.msra.mxu0 0.0
    %297 = vmatprep.mubr.f32.mxu0 0.0
    %298 = vmatmul.mubr.f32.gmra.mrb[0].mxu0 %v231
    %v299 = vpop.f32.mrb[0].mxu0
    %v300 = vadd.f32 %v227, %v299
    %v301 = vpop.f32.mrb[0].mxu0
    %302 = vdwg.mxu0
    %v303 = vmax.f32 %v300, 0.0
    %v304 = vld [vmem:[%s7] sm:$0xff]
    %v305 = vld [vmem:[%s7 + $0x8] sm:$0xff]
    %v306 = vld [vmem:[%s7 + $0x10] sm:$0xff]
    %v307 = vld [vmem:[%s7 + $0x18] sm:$0xff]
    %v308 = vld [vmem:[%s7 + $0x20] sm:$0xff]
    %v309 = vld [vmem:[%s7 + $0x28] sm:$0xff]
    %v310 = vld [vmem:[%s7 + $0x30] sm:$0xff]
    %v311 = vld [vmem:[%s7 + $0x38] sm:$0xff]
    %v312 = vld [vmem:[%s8] sm:$0x1]
    %v314 = vlaneseq
    %v315 = vshrl.u32 %v314, 7
    %v316 = vsub.s32 0, %v315
    %v317 = vrot.slane %v312, %v316
    %v320 = vsel %vm143, %v303, 0
    %322 = vmatprep.subr.mxu0 0.0
    %323 = vmatpush1.msra.mxu0 %v304
    %324 = vmatprep.subr.mxu0 0.0
    %325 = vmatpush1.msra.mxu0 %v305
    %326 = vmatprep.subr.mxu0 0.0
    %327 = vmatpush1.msra.mxu0 %v306
    %328 = vmatprep.subr.mxu0 0.0
    %329 = vmatpush1.msra.mxu0 %v307
    %330 = vmatprep.subr.mxu0 0.0
    %331 = vmatpush1.msra.mxu0 %v308
    %332 = vmatprep.subr.mxu0 0.0
    %333 = vmatpush1.msra.mxu0 %v309
    %334 = vmatprep.subr.mxu0 0.0
    %335 = vmatpush1.msra.mxu0 %v310
    %336 = vmatprep.subr.mxu0 0.0
    %337 = vmatpush1.msra.mxu0 %v311
    %338 = vmatprep.subr.mxu0 0.0
    %339 = vmatpush1.msra.mxu0 0.0
    %340 = vmatprep.subr.mxu0 0.0
    %341 = vmatpush1.msra.mxu0 0.0
    %342 = vmatprep.subr.mxu0 0.0
    %343 = vmatpush1.msra.mxu0 0.0
    %344 = vmatprep.subr.mxu0 0.0
    %345 = vmatpush1.msra.mxu0 0.0
    %346 = vmatprep.subr.mxu0 0.0
    %347 = vmatpush1.msra.mxu0 0.0
    %348 = vmatprep.subr.mxu0 0.0
    %349 = vmatpush1.msra.mxu0 0.0
    %350 = vmatprep.subr.mxu0 0.0
    %351 = vmatpush1.msra.mxu0 0.0
    %352 = vmatprep.subr.mxu0 0.0
    %353 = vmatpush1.msra.mxu0 0.0
    %354 = vmatprep.subr.mxu0 0.0
    %355 = vmatpush1.msra.mxu0 0.0
    %356 = vmatprep.subr.mxu0 0.0
    %357 = vmatpush1.msra.mxu0 0.0
    %358 = vmatprep.subr.mxu0 0.0
    %359 = vmatpush1.msra.mxu0 0.0
    %360 = vmatprep.subr.mxu0 0.0
    %361 = vmatpush1.msra.mxu0 0.0
    %362 = vmatprep.subr.mxu0 0.0
    %363 = vmatpush1.msra.mxu0 0.0
    %364 = vmatprep.subr.mxu0 0.0
    %365 = vmatpush1.msra.mxu0 0.0
    %366 = vmatprep.subr.mxu0 0.0
    %367 = vmatpush1.msra.mxu0 0.0
    %368 = vmatprep.subr.mxu0 0.0
    %369 = vmatpush1.msra.mxu0 0.0
    %370 = vmatprep.subr.mxu0 0.0
    %371 = vmatpush1.msra.mxu0 0.0
    %372 = vmatprep.subr.mxu0 0.0
    %373 = vmatpush1.msra.mxu0 0.0
    %374 = vmatprep.subr.mxu0 0.0
    %375 = vmatpush1.msra.mxu0 0.0
    %376 = vmatprep.subr.mxu0 0.0
    %377 = vmatpush1.msra.mxu0 0.0
    %378 = vmatprep.subr.mxu0 0.0
    %379 = vmatpush1.msra.mxu0 0.0
    %380 = vmatprep.subr.mxu0 0.0
    %381 = vmatpush1.msra.mxu0 0.0
    %382 = vmatprep.subr.mxu0 0.0
    %383 = vmatpush1.msra.mxu0 0.0
    %384 = vmatprep.subr.mxu0 0.0
    %385 = vmatpush1.msra.mxu0 0.0
    %386 = vmatprep.mubr.f32.mxu0 0.0
    %387 = vmatmul.mubr.f32.gmra.mrb[0].mxu0 %v320
    %v388 = vpop.f32.mrb[0].mxu0
    %v389 = vadd.f32 %v317, %v388
    %v390 = vpop.f32.mrb[0].mxu0
    %391 = vdwg.mxu0
    %v392 = vxor.u32 %v389, 2147483648
    %v393 = vmul.f32 %v392, 1.442695
    %v394 = vpow.pop %v393
    %v395 = vadd.f32 %v394, 1.0
    %v396 = vrcp.pop %v395
    %v397 = vmul.f32 1.0, %v396
    %398 = vst [vmem:[#allocation2] sm:$0xff] %v397
    // Predicated region
    $region38: #{autoencoder_forward_pallas.1} parent=1 // pred_check
      _
    $region39: #{autoencoder_forward_pallas.1} parent=1 // pred_check_branch
      %400 = sbr.rel (0) target = $region41
    $region40: #{autoencoder_forward_pallas.1} parent=1 // pred_region
      %s402 = ssub.s32 128, 128
      %403 = vsyncadd [#allocation3], %s402
      %s405 = sshll.u32 [#allocation2], 4
      %s406 = int_to_ptr.vmem [resolvable:$true] %s405
      %408 = dma.vmem_to_hbm [thread:$0]  %s406, 128, %s9, [#allocation3]
    $region41: #{autoencoder_forward_pallas.1} parent=1 // pred_fallthru
      _
    // Predicated region
    $region42: #{autoencoder_forward_pallas.1} parent=1 // pred_check
      _
    $region43: #{autoencoder_forward_pallas.1} parent=1 // pred_check_branch
      %410 = sbr.rel (0) target = $region45
    $region44: #{autoencoder_forward_pallas.1} parent=1 // pred_region
      %411 = dma.done [#allocation3], 128
    $region45: #{autoencoder_forward_pallas.1} parent=1 // pred_fallthru
      _
    %412 = vsyncpa [#allocation3], 1

</llo_original>
